<compile_context>
chip_gen: v6e
topology: v6e:2x2x1
jax: 0.10.0
libtpu: 0.0.40
codegen_flags: <defaults>
</compile_context>

<pallas_src>
import functools

import jax
import jax.numpy as jnp
import numpy as np
from jax.experimental import pallas as pl
from jax.experimental.pallas import tpu as pltpu

LANES = 128       # TPU lane width; every feature axis is padded to this
Q_OFF = 64        # q_emb starts at this lane inside the packed activation slab
MAX_TILE_B = 256  # batch-tile cap (multiple of 256 keeps the v6e/v7x MXU full)


def _choose_tile_b(batch):
    """Batch tile: multiple of 8 (f32 sublanes), capped at MAX_TILE_B, and we keep
    the grid length >= 2 whenever the batch allows it (v7x dual-TC sharding)."""
    bp8 = ((batch + 7) // 8) * 8
    if bp8 <= 8:
        return 8
    half = (((bp8 // 2) + 7) // 8) * 8
    return max(8, min(MAX_TILE_B, half))


def moe_kernel(thr_ref, acts_ref, params_ref, out_ref, *, valid_v):
    """One fused step over a (TILE_B, 128) batch tile.

    acts_ref  : (tb, 128)   lanes [0,V)            = logits
                            lanes [Q_OFF,Q_OFF+Q)  = q_emb        (rest zero)
    params_ref: (392, 128)  rows [0,128)   W1 slab (rows [Q_OFF,Q_OFF+Q) hold W1)
                            rows [128,256) W2 slab
                            rows [256,384) Wc2 slab (cols shifted to [V,2V))
                            rows [384,392) b1 / b2 / uniform / bc2(shifted) / pad
    out_ref   : (tb, 128)   lanes [0,V) fusion, [V,2V) q_out, lane 2V gate flag
    """
    tb = acts_ref.shape[0]
    acts = acts_ref[...]

    w1 = params_ref[0:LANES, :]
    w2 = params_ref[LANES:2 * LANES, :]
    wc2 = params_ref[2 * LANES:3 * LANES, :]
    tail = params_ref[3 * LANES:3 * LANES + 8, :]   # one aligned (8,128) load
    b1 = tail[0:1, :]
    b2 = tail[1:2, :]
    uni = tail[2:3, :]
    bc2 = tail[3:4, :]

    # c_1 MLP: Linear -> ReLU -> Linear.  The logits lanes of `acts` hit all-zero
    # W1 rows, so acts @ W1 == q_emb @ W1 exactly (grad_mul_const fwd == identity).
    h = jnp.maximum(jnp.dot(acts, w1, preferred_element_type=jnp.float32) + b1, 0.0)
    q_pred = jnp.dot(h, w2, preferred_element_type=jnp.float32) + b2

    lane = jax.lax.broadcasted_iota(jnp.int32, (tb, LANES), 1)
    valid = lane < valid_v

    # Masked softmax over the first V lanes.  Exact divide (feeds the gate decision;
    # approx reciprocal could flip the gate near the threshold boundary).
    qm = jnp.where(valid, q_pred, jnp.float32(-1e30))
    m = jnp.max(qm, axis=-1, keepdims=True)
    e = jnp.exp(qm - m)                                   # masked lanes -> 0
    s = jnp.sum(e, axis=-1, keepdims=True)
    sm = e / s

    # F.pairwise_distance(softmax(q_pred), uniform) with p=2, eps=1e-6 — with the
    # sqrt kept so the comparison matches the reference exactly (no dist^2 trick).
    diff = jnp.where(valid, sm - uni + jnp.float32(1e-6), 0.0)
    dist = jnp.sqrt(jnp.sum(diff * diff, axis=-1, keepdims=True))   # (tb, 1)

    gate = dist < thr_ref[0]                              # (tb, 1) bool, per-row

    # if gate: fusion = logits else logits * sigmoid(q_pred)  (per-row select).
    # Only lanes [0,V) are consumed; the q_emb lanes are masked out on store.
    fusion = jnp.where(gate, acts, acts * jax.nn.sigmoid(q_pred))

    # c_2: Wc2/bc2 were packed into columns [V,2V), so q_out lands in output
    # lanes [V,2V) directly -- no in-kernel roll/shift needed.
    qout = jnp.dot(q_pred, wc2, preferred_element_type=jnp.float32) + bc2

    gate_f = jnp.broadcast_to(gate.astype(jnp.float32), (tb, LANES))

    # Single lane-dense 128-wide store; the three pieces have disjoint lane support.
    out_ref[...] = (jnp.where(valid, fusion, 0.0)
                    + qout
                    + jnp.where(lane == 2 * valid_v, gate_f, 0.0))


def pack_params(p, q_dim, h_dim, v_dim):
    """Pack all MOE parameters into one (392, 128) lane-dense f32 slab (done once)."""
    assert q_dim <= LANES - Q_OFF and h_dim <= LANES and 2 * v_dim + 1 <= LANES
    slab = jnp.zeros((3 * LANES + 8, LANES), jnp.float32)
    # W1: rows shifted to [Q_OFF, Q_OFF+Q) to match q_emb's lanes in the acts slab.
    slab = slab.at[Q_OFF:Q_OFF + q_dim, :h_dim].set(p["w1"].astype(jnp.float32))
    # W2: rows [0,H), cols [0,V).
    slab = slab.at[LANES:LANES + h_dim, :v_dim].set(p["w2"].astype(jnp.float32))
    # Wc2: columns shifted to [V,2V) so q_out lands in output lanes [V,2V) for free.
    slab = slab.at[2 * LANES:2 * LANES + v_dim, v_dim:2 * v_dim].set(
        p["wc2"].astype(jnp.float32))
    base = 3 * LANES
    slab = slab.at[base + 0, :h_dim].set(p["b1"].reshape(-1).astype(jnp.float32))
    slab = slab.at[base + 1, :v_dim].set(p["b2"].reshape(-1).astype(jnp.float32))
    slab = slab.at[base + 2, :v_dim].set(p["uniform"].reshape(-1).astype(jnp.float32))
    slab = slab.at[base + 3, v_dim:2 * v_dim].set(p["bc2"].reshape(-1).astype(jnp.float32))
    return slab                                            # (392, 128)


def moe_forward(logits, q_emb, param_slab, threshold):
    B, V = logits.shape
    Q = q_emb.shape[1]
    assert V <= Q_OFF and Q <= LANES - Q_OFF and 2 * V + 1 <= LANES

    tile_b = _choose_tile_b(B)
    Bp = ((B + tile_b - 1) // tile_b) * tile_b

    # One 128-lane activation slab per row: logits in lanes [0,V), q_emb in [Q_OFF,Q_OFF+Q).
    # TODO(synk): in the real model the non_debias_net backbone should emit this packed
    # layout directly so this pad/concat (an extra HBM round-trip) disappears.
    acts = jnp.concatenate(
        [jnp.pad(logits.astype(jnp.float32), ((0, Bp - B), (0, Q_OFF - V))),
         jnp.pad(q_emb.astype(jnp.float32), ((0, Bp - B), (0, LANES - Q_OFF - Q)))],
        axis=1)

    thr = jnp.asarray(threshold, jnp.float32).reshape(1)

    out = pl.pallas_call(
        functools.partial(moe_kernel, valid_v=V),
        grid=(Bp // tile_b,),
        in_specs=[
            pl.BlockSpec((1,), lambda i: (0,),
                         memory_space=pltpu.MemorySpace.SMEM),        # threshold scalar
            pl.BlockSpec((tile_b, LANES), lambda i: (i, 0)),           # activations
            pl.BlockSpec(param_slab.shape, lambda i: (0, 0)),          # params (resident)
        ],
        out_specs=pl.BlockSpec((tile_b, LANES), lambda i: (i, 0)),
        out_shape=jax.ShapeDtypeStruct((Bp, LANES), jnp.float32),
        compiler_params=pltpu.CompilerParams(
            dimension_semantics=("parallel",)),
    )(thr, acts, param_slab)

    fusion = out[:B, :V]
    qout = out[:B, V:2 * V]
    gate = out[:B, 2 * V:2 * V + 1] > 0.5
    return fusion, qout, gate


def moe_reference(logits, q_emb, p):
    # Pure-JAX reference (unpadded) for correctness checking.
    h = jnp.maximum(q_emb @ p["w1"] + p["b1"], 0.0)
    q_pred = h @ p["w2"] + p["b2"]
    sm = jax.nn.softmax(q_pred, axis=-1)
    dist = jnp.sqrt(jnp.sum((sm - p["uniform"] + 1e-6) ** 2, axis=-1, keepdims=True))
    gate = dist < p["threshold"].reshape(1, 1)
    fusion = jnp.where(gate, logits, logits * jax.nn.sigmoid(q_pred))
    qout = q_pred @ p["wc2"] + p["bc2"]
    return fusion, qout, gate


if __name__ == "__main__":
    # Small shapes implied by the forward: q_emb dim=32, MLP hidden=32, output_size=16.
    # B=16 exercises the batch grid (2 tiles of 8). NOTE: the PyTorch `if gate:` assumes
    # a single scalar gate (B==1); the kernel generalizes it to a per-row select.
    B, Q, H, V = 16, 32, 32, 16

    key = jax.random.PRNGKey(0)
    ks = jax.random.split(key, 10)

    params = {
        # c_1 MLP (weights stored pre-transposed: (in, out))
        "w1": jax.random.normal(ks[0], (Q, H), jnp.float32) * 0.1,
        "b1": jax.random.normal(ks[1], (1, H), jnp.float32) * 0.1,
        "w2": jax.random.normal(ks[2], (H, V), jnp.float32) * 0.1,
        "b2": jax.random.normal(ks[3], (1, V), jnp.float32) * 0.1,
        # nn.Parameter(torch.rand(output_size)) / nn.Parameter(torch.rand(1))
        "uniform": jax.random.uniform(ks[4], (1, V), jnp.float32),
        "threshold": jax.random.uniform(ks[5], (1, 1), jnp.float32),
        # c_2 = nn.Linear(output_size, output_size), pre-transposed
        "wc2": jax.random.normal(ks[6], (V, V), jnp.float32) * 0.1,
        "bc2": jax.random.normal(ks[7], (1, V), jnp.float32) * 0.1,
    }

    # Stand-ins for non_debias_net(batch) outputs.
    logits = jax.random.normal(ks[8], (B, V), jnp.float32)
    q_emb = jax.random.normal(ks[9], (B, Q), jnp.float32)

    slab = pack_params(params, Q, H, V)

    # Two thresholds: the module's random one (gate=False path by a wide margin) and a
    # large one (gate=True path by a wide margin) — both deterministic w.r.t. the gate.
    for thr_value in (params["threshold"], jnp.full((1, 1), 5.0, jnp.float32)):
        fusion, qout, gate = moe_forward(logits, q_emb, slab, thr_value)
        jax.block_until_ready((fusion, qout, gate))

        p_chk = dict(params, threshold=thr_value)
        ref_fusion, ref_qout, ref_gate = moe_reference(logits, q_emb, p_chk)
        np.testing.assert_allclose(np.asarray(fusion), np.asarray(ref_fusion),
                                   rtol=1e-5, atol=1e-5)
        np.testing.assert_allclose(np.asarray(qout), np.asarray(ref_qout),
                                   rtol=1e-5, atol=1e-5)
        np.testing.assert_array_equal(np.asarray(gate), np.asarray(ref_gate))

    # Non-multiple batch (exercises the batch-padding path).
    fusion5, qout5, gate5 = moe_forward(logits[:5], q_emb[:5], slab, params["threshold"])
    jax.block_until_ready((fusion5, qout5, gate5))
    rf, rq, rg = moe_reference(logits[:5], q_emb[:5], params)
    np.testing.assert_allclose(np.asarray(fusion5), np.asarray(rf), rtol=1e-5, atol=1e-5)
    np.testing.assert_allclose(np.asarray(qout5), np.asarray(rq), rtol=1e-5, atol=1e-5)
    np.testing.assert_array_equal(np.asarray(gate5), np.asarray(rg))

    # Re-assemble the PyTorch-style output dict for the module's own threshold.
    fusion, qout, gate = moe_forward(logits, q_emb, slab, params["threshold"])
    gate_all = bool(np.asarray(gate).all())   # module semantics assume a scalar gate
    out = {"logits": fusion, "logits_q": (qout if gate_all else None), "gate": gate}

    print("KERNEL_OK")
</pallas_src>

<mosaic_0001>
module attributes {stable_mosaic.version = 11 : i64} {
  func.func @moe_kernel(%arg0: i32, %arg1: memref<1xf32, #tpu.memory_space<smem>>, %arg2: memref<8x128xf32, #tpu.memory_space<vmem>>, %arg3: memref<392x128xf32, #tpu.memory_space<vmem>>, %arg4: memref<8x128xf32, #tpu.memory_space<vmem>>) attributes {dimension_semantics = [#tpu.dimension_semantics<parallel>], iteration_bounds = array<i64: 2>, scalar_prefetch = 0 : i64, scratch_operands = 0 : i64, tpu.core_type = #tpu.core_type<tc>, window_params = [{transform_indices = @transform_0, window_bounds = array<i64: 1>}, {transform_indices = @transform_1, window_bounds = array<i64: 8, 128>}, {pipeline_mode = #tpu.pipeline_mode<synchronous>, transform_indices = @transform_2, window_bounds = array<i64: 392, 128>}, {transform_indices = @transform_3, window_bounds = array<i64: 8, 128>}]} {
    %c0 = arith.constant 0 : index
    %c0_0 = arith.constant 0 : index
    %0 = vector.load %arg2[%c0, %c0_0] : memref<8x128xf32, #tpu.memory_space<vmem>>, vector<8x128xf32>
    %c0_1 = arith.constant 0 : index
    %c0_2 = arith.constant 0 : index
    %1 = vector.load %arg3[%c0_1, %c0_2] : memref<392x128xf32, #tpu.memory_space<vmem>>, vector<128x128xf32>
    %c128 = arith.constant 128 : index
    %c0_3 = arith.constant 0 : index
    %2 = vector.load %arg3[%c128, %c0_3] : memref<392x128xf32, #tpu.memory_space<vmem>>, vector<128x128xf32>
    %c256 = arith.constant 256 : index
    %c0_4 = arith.constant 0 : index
    %3 = vector.load %arg3[%c256, %c0_4] : memref<392x128xf32, #tpu.memory_space<vmem>>, vector<128x128xf32>
    %c384 = arith.constant 384 : index
    %c0_5 = arith.constant 0 : index
    %4 = vector.load %arg3[%c384, %c0_5] : memref<392x128xf32, #tpu.memory_space<vmem>>, vector<8x128xf32>
    %5 = vector.extract_strided_slice %4 {offsets = [0, 0], sizes = [1, 128], strides = [1, 1]} : vector<8x128xf32> to vector<1x128xf32>
    %6 = vector.extract_strided_slice %4 {offsets = [1, 0], sizes = [1, 128], strides = [1, 1]} : vector<8x128xf32> to vector<1x128xf32>
    %7 = vector.extract_strided_slice %4 {offsets = [2, 0], sizes = [1, 128], strides = [1, 1]} : vector<8x128xf32> to vector<1x128xf32>
    %8 = vector.extract_strided_slice %4 {offsets = [3, 0], sizes = [1, 128], strides = [1, 1]} : vector<8x128xf32> to vector<1x128xf32>
    %cst = arith.constant dense<0.000000e+00> : vector<8x128xf32>
    %9 = tpu.matmul %0, %1, %cst {dimension_numbers = #tpu.dot_dimension_numbers<[1], [0], [0], [1], [0, 0, 1, 1], [], []>} : vector<8x128xf32>, vector<128x128xf32>, vector<8x128xf32> -> vector<8x128xf32>
    %10 = vector.broadcast %5 : vector<1x128xf32> to vector<8x128xf32>
    %11 = arith.addf %9, %10 : vector<8x128xf32>
    %cst_6 = arith.constant 0.000000e+00 : f32
    %12 = vector.broadcast %cst_6 : f32 to vector<8x128xf32>
    %13 = arith.maximumf %11, %12 : vector<8x128xf32>
    %cst_7 = arith.constant dense<0.000000e+00> : vector<8x128xf32>
    %14 = tpu.matmul %13, %2, %cst_7 {dimension_numbers = #tpu.dot_dimension_numbers<[1], [0], [0], [1], [0, 0, 1, 1], [], []>} : vector<8x128xf32>, vector<128x128xf32>, vector<8x128xf32> -> vector<8x128xf32>
    %15 = vector.broadcast %6 : vector<1x128xf32> to vector<8x128xf32>
    %16 = arith.addf %14, %15 : vector<8x128xf32>
    %17 = tpu.iota {dimensions = array<i32: 1>} : vector<8x128xi32>
    %c16_i32 = arith.constant 16 : i32
    %18 = vector.broadcast %c16_i32 : i32 to vector<8x128xi32>
    %19 = arith.cmpi slt, %17, %18 : vector<8x128xi32>
    %cst_8 = arith.constant -1.000000e+30 : f32
    %20 = vector.broadcast %cst_8 : f32 to vector<8x128xf32>
    %21 = arith.select %19, %16, %20 : vector<8x128xi1>, vector<8x128xf32>
    %cst_9 = arith.constant dense<0xFF800000> : vector<8xf32>
    %22 = vector.multi_reduction <maximumf>, %21, %cst_9 [1] : vector<8x128xf32> to vector<8xf32>
    %23 = vector.shape_cast %22 : vector<8xf32> to vector<8x1xf32>
    %24 = vector.broadcast %23 : vector<8x1xf32> to vector<8x128xf32>
    %25 = arith.subf %21, %24 : vector<8x128xf32>
    %26 = math.exp %25 : vector<8x128xf32>
    %cst_10 = arith.constant dense<0.000000e+00> : vector<8xf32>
    %27 = vector.multi_reduction <add>, %26, %cst_10 [1] : vector<8x128xf32> to vector<8xf32>
    %28 = vector.shape_cast %27 : vector<8xf32> to vector<8x1xf32>
    %29 = vector.broadcast %28 : vector<8x1xf32> to vector<8x128xf32>
    %30 = arith.divf %26, %29 : vector<8x128xf32>
    %31 = vector.broadcast %7 : vector<1x128xf32> to vector<8x128xf32>
    %32 = arith.subf %30, %31 : vector<8x128xf32>
    %cst_11 = arith.constant 9.99999997E-7 : f32
    %33 = vector.broadcast %cst_11 : f32 to vector<8x128xf32>
    %34 = arith.addf %32, %33 : vector<8x128xf32>
    %cst_12 = arith.constant 0.000000e+00 : f32
    %35 = vector.broadcast %cst_12 : f32 to vector<8x128xf32>
    %36 = arith.select %19, %34, %35 : vector<8x128xi1>, vector<8x128xf32>
    %37 = arith.mulf %36, %36 : vector<8x128xf32>
    %cst_13 = arith.constant dense<0.000000e+00> : vector<8xf32>
    %38 = vector.multi_reduction <add>, %37, %cst_13 [1] : vector<8x128xf32> to vector<8xf32>
    %39 = vector.shape_cast %38 : vector<8xf32> to vector<8x1xf32>
    %40 = math.sqrt %39 : vector<8x1xf32>
    %c0_14 = arith.constant 0 : index
    %41 = memref.load %arg1[%c0_14] : memref<1xf32, #tpu.memory_space<smem>>
    %42 = vector.broadcast %41 : f32 to vector<8x1xf32>
    %43 = arith.cmpf olt, %40, %42 : vector<8x1xf32>
    %44 = arith.negf %16 : vector<8x128xf32>
    %45 = math.exp %44 : vector<8x128xf32>
    %cst_15 = arith.constant 1.000000e+00 : f32
    %46 = vector.broadcast %cst_15 : f32 to vector<8x128xf32>
    %47 = arith.addf %46, %45 : vector<8x128xf32>
    %48 = arith.divf %46, %47 : vector<8x128xf32>
    %49 = arith.mulf %0, %48 : vector<8x128xf32>
    %50 = vector.shape_cast %43 : vector<8x1xi1> to vector<8x1xi1>
    %51 = vector.broadcast %50 : vector<8x1xi1> to vector<8x128xi1>
    %52 = arith.select %51, %0, %49 : vector<8x128xi1>, vector<8x128xf32>
    %cst_16 = arith.constant dense<0.000000e+00> : vector<8x128xf32>
    %53 = tpu.matmul %16, %3, %cst_16 {dimension_numbers = #tpu.dot_dimension_numbers<[1], [0], [0], [1], [0, 0, 1, 1], [], []>} : vector<8x128xf32>, vector<128x128xf32>, vector<8x128xf32> -> vector<8x128xf32>
    %54 = vector.broadcast %8 : vector<1x128xf32> to vector<8x128xf32>
    %55 = arith.addf %53, %54 : vector<8x128xf32>
    %56 = arith.extui %43 : vector<8x1xi1> to vector<8x1xi32>
    %57 = arith.sitofp %56 : vector<8x1xi32> to vector<8x1xf32>
    %58 = vector.shape_cast %57 : vector<8x1xf32> to vector<8x1xf32>
    %59 = vector.broadcast %58 : vector<8x1xf32> to vector<8x128xf32>
    %cst_17 = arith.constant 0.000000e+00 : f32
    %60 = vector.broadcast %cst_17 : f32 to vector<8x128xf32>
    %61 = arith.select %19, %52, %60 : vector<8x128xi1>, vector<8x128xf32>
    %62 = arith.addf %61, %55 : vector<8x128xf32>
    %c32_i32 = arith.constant 32 : i32
    %63 = vector.broadcast %c32_i32 : i32 to vector<8x128xi32>
    %64 = arith.cmpi eq, %17, %63 : vector<8x128xi32>
    %cst_18 = arith.constant 0.000000e+00 : f32
    %65 = vector.broadcast %cst_18 : f32 to vector<8x128xf32>
    %66 = arith.select %64, %59, %65 : vector<8x128xi1>, vector<8x128xf32>
    %67 = arith.addf %62, %66 : vector<8x128xf32>
    %c0_19 = arith.constant 0 : index
    %c0_20 = arith.constant 0 : index
    %68 = vector.load %arg4[%c0_19, %c0_20] : memref<8x128xf32, #tpu.memory_space<vmem>>, vector<8x128xf32>
    tpu.vector_store %arg4[%c0_19, %c0_20], %67 {strides = array<i32>} : memref<8x128xf32, #tpu.memory_space<vmem>>, vector<8x128xf32>,
    return
  }
  func.func @transform_0(%arg0: i32) -> i32 {
    %c0_i32 = arith.constant 0 : i32
    %c0_i32_0 = arith.constant 0 : i32
    return %c0_i32 : i32
  }
  func.func @transform_1(%arg0: i32) -> (i32, i32) {
    %c0_i32 = arith.constant 0 : i32
    %c0_i32_0 = arith.constant 0 : i32
    return %arg0, %c0_i32 : i32, i32
  }
  func.func @transform_2(%arg0: i32) -> (i32, i32) {
    %c0_i32 = arith.constant 0 : i32
    %c0_i32_0 = arith.constant 0 : i32
    %c0_i32_1 = arith.constant 0 : i32
    return %c0_i32, %c0_i32_0 : i32, i32
  }
  func.func @transform_3(%arg0: i32) -> (i32, i32) {
    %c0_i32 = arith.constant 0 : i32
    %c0_i32_0 = arith.constant 0 : i32
    return %arg0, %c0_i32 : i32, i32
  }
}

</mosaic_0001>

<llo_original>
// kernel: tpu_custom_call.1
$region0: #{tpu_custom_call.1}
  #allocation0 [shape = 'u32[]', space=smem, size = 0x4, offset = 0x4, fixed_abs, tag = 'smem constant byte address 0x4 - core index']
  #allocation1 [shape = 'u32[144,128]{1,0:T(1,128)}', space=vmem, size = 0x12000, scoped, tag = 'internal scratch']
  #allocation2 [shape = 'f32[1]{0:T(128)S(6)}', space=smem, size = 0x200, scoped, tag = 'scoped memory for tpu_custom_call.1']
  %s0 = inlined_call_operand.<no memory space> [shape: f32[1], index: 0, kind: input, shape index: {}]
  %s1 = inlined_call_operand.hbm [shape: f32[16,128], index: 1, kind: input, shape index: {}]
  %s2 = inlined_call_operand.hbm [shape: f32[392,128], index: 2, kind: input, shape index: {}]
  %s3 = inlined_call_operand.hbm [shape: f32[16,128], index: 3, kind: output, shape index: {}]
  %s4 = sld [smem:[#allocation0]]
  $region53: #{tpu_custom_call.1} parent=0
    _
  %s6 = ssub.s32 1, %s4
  %s7 = scalar_select 0, %s6, %s4
  %8 = sst [smem:[#allocation2]] %s0
  $region1: #{tpu_custom_call.1} parent=0
    #allocation3 [shape = 'u8[8192]{0}', space=vmem, size = 0x2000, scoped, tag = 'input window, operand 1']
    #allocation4 [shape = 's32[2]{0}', space=sflag, size = 0x8, scoped, tag = 'scoped memory for tpu_custom_call.1']
    #allocation5 [shape = 's32[2]{0}', space=sflag, size = 0x8, scoped, tag = 'scoped memory for tpu_custom_call.1']
    #allocation6 [shape = 'u8[200704]{0}', space=vmem, size = 0x31000, scoped, tag = 'input window, operand 2, single buffered']
    #allocation7 [shape = 's32[1]{0}', space=sflag, size = 0x4, scoped, tag = 'scoped memory for tpu_custom_call.1']
    #allocation8 [shape = 'u8[8192]{0}', space=vmem, size = 0x2000, scoped, tag = 'output window, operand 0']
    %9 = vsyncpa [#allocation4], 0
    %s10 = scalar_lea.sflag [#allocation4], 1
    %11 = vsyncpa %s10, 0
    %12 = vsyncpa [#allocation7], 0
    %13 = vsyncpa [#allocation5], 0
    %s14 = scalar_lea.sflag [#allocation5], 1
    %15 = vsyncpa %s14, 0
    loop: start=0, step=1, limit=4
    $region2: #{tpu_custom_call.1} parent=1 // loop_pre_header
      _
    $region3: #{tpu_custom_call.1} parent=1 // loop_header
      %s17 = sphi 0, %s21
      %p18 = scmp.ge.s32.totalorder %s17, 4
      %s25 = sphi 0, %s25
      %s27 = sphi 0, %s25
      %s28 = sphi 0, %s27
      %s42 = sphi 0, %s28
      %s48 = sphi 0, %s50
      %s51 = sphi 0, %s48
      %s52 = sphi 0, %s51
      %s68 = sphi 0, %s52
      %s72 = sphi 0, %s72
      %s74 = sphi 0, %s72
      %s75 = sphi 0, %s74
      %s89 = sphi 0, %s75
      %s95 = sphi 0, %s97
      %s98 = sphi 0, %s95
      %s99 = sphi 0, %s98
      %s115 = sphi 0, %s99
    $region4: #{tpu_custom_call.1} parent=1 // loop_header_branch
      %20 = sbr.rel (%p18) target = $region8
    $region5: #{tpu_custom_call.1} parent=1 // loop_body
      %s22 = ssub.s32 %s17, 1
      %s23 = ssub.s32 %s17, 2
      %s24 = sadd.s32 %s17, 1
      %s26 = sadd.s32 %s25, 1
      %p29 = scmp.eq.s32.totalorder %s17, 1
      %p30 = scmp.ne.s32.totalorder %s25, %s27
      %p31 = scmp.eq.s32.totalorder %s17, 0
      %p32 = por %p30, %p31
      %p33 = scmp.ne.s32.totalorder %s25, %s27
      %p34 = scmp.eq.s32.totalorder %s22, 1
      %p35 = por %p33, %p34
      %p36 = scmp.ne.s32.totalorder %s27, %s28
      %p37 = scmp.eq.s32.totalorder %s22, 0
      %p38 = por %p36, %p37
      %p39 = scmp.ne.s32.totalorder %s27, %s28
      %p40 = scmp.eq.s32.totalorder %s23, 1
      %p41 = por %p39, %p40
      %p43 = scmp.ne.s32.totalorder %s28, %s42
      %p44 = scmp.eq.s32.totalorder %s23, 0
      %p45 = por %p43, %p44
      %s46 = ssub.s32 %s17, %s24
      %p47 = scmp.eq.s32.totalorder %s46, 0
      %s49 = sadd.s32 %s48, 1
      %s50 = scalar_select %p47, %s48, %s49
      %p53 = pneg %p47
      %p54 = scmp.eq.s32.totalorder %s17, 1
      %p55 = por %p53, %p54
      %p56 = scmp.ne.s32.totalorder %s48, %s51
      %p57 = scmp.eq.s32.totalorder %s17, 0
      %p58 = por %p56, %p57
      %p59 = scmp.ne.s32.totalorder %s48, %s51
      %p60 = scmp.eq.s32.totalorder %s22, 1
      %p61 = por %p59, %p60
      %p62 = scmp.ne.s32.totalorder %s51, %s52
      %p63 = scmp.eq.s32.totalorder %s22, 0
      %p64 = por %p62, %p63
      %p65 = scmp.ne.s32.totalorder %s51, %s52
      %p66 = scmp.eq.s32.totalorder %s23, 1
      %p67 = por %p65, %p66
      %p69 = scmp.ne.s32.totalorder %s52, %s68
      %p70 = scmp.eq.s32.totalorder %s23, 0
      %p71 = por %p69, %p70
      %s73 = sadd.s32 %s72, 1
      %p76 = scmp.eq.s32.totalorder %s17, 1
      %p77 = scmp.ne.s32.totalorder %s72, %s74
      %p78 = scmp.eq.s32.totalorder %s17, 0
      %p79 = por %p77, %p78
      %p80 = scmp.ne.s32.totalorder %s72, %s74
      %p81 = scmp.eq.s32.totalorder %s22, 1
      %p82 = por %p80, %p81
      %p83 = scmp.ne.s32.totalorder %s74, %s75
      %p84 = scmp.eq.s32.totalorder %s22, 0
      %p85 = por %p83, %p84
      %p86 = scmp.ne.s32.totalorder %s74, %s75
      %p87 = scmp.eq.s32.totalorder %s23, 1
      %p88 = por %p86, %p87
      %p90 = scmp.ne.s32.totalorder %s75, %s89
      %p91 = scmp.eq.s32.totalorder %s23, 0
      %p92 = por %p90, %p91
      %s93 = ssub.s32 %s17, %s24
      %p94 = scmp.eq.s32.totalorder %s93, 0
      %s96 = sadd.s32 %s95, 1
      %s97 = scalar_select %p94, %s95, %s96
      %p100 = pneg %p94
      %p101 = scmp.eq.s32.totalorder %s17, 1
      %p102 = por %p100, %p101
      %p103 = scmp.ne.s32.totalorder %s95, %s98
      %p104 = scmp.eq.s32.totalorder %s17, 0
      %p105 = por %p103, %p104
      %p106 = scmp.ne.s32.totalorder %s95, %s98
      %p107 = scmp.eq.s32.totalorder %s22, 1
      %p108 = por %p106, %p107
      %p109 = scmp.ne.s32.totalorder %s98, %s99
      %p110 = scmp.eq.s32.totalorder %s22, 0
      %p111 = por %p109, %p110
      %p112 = scmp.ne.s32.totalorder %s98, %s99
      %p113 = scmp.eq.s32.totalorder %s23, 1
      %p114 = por %p112, %p113
      %p116 = scmp.ne.s32.totalorder %s99, %s115
      %p117 = scmp.eq.s32.totalorder %s23, 0
      %p118 = por %p116, %p117
      %p119 = scmp.le.s32.totalorder 1, %s17
      %p120 = scmp.lt.s32.totalorder %s17, 3
      %p121 = pnand %p119, %p120
      %p122 = pneg %p121
      // Predicated region
      $region9: #{tpu_custom_call.1} parent=5 // pred_check
        _
      $region10: #{tpu_custom_call.1} parent=5 // pred_check_branch
        %124 = sbr.rel (%p121) target = $region12
      $region11: #{tpu_custom_call.1} parent=5 // pred_region
        %s125 = ssub.s32 %s17, 1
        // Predicated region
        $region13: #{tpu_custom_call.1} parent=11 // pred_check
          %p126 = pneg %p38
        $region14: #{tpu_custom_call.1} parent=11 // pred_check_branch
          %128 = sbr.rel (%p126) target = $region16
        $region15: #{tpu_custom_call.1} parent=11 // pred_region
          _
        $region16: #{tpu_custom_call.1} parent=11 // pred_fallthru
          _
        // Predicated region
        $region17: #{tpu_custom_call.1} parent=11 // pred_check
          %p129 = pneg %p85
        $region18: #{tpu_custom_call.1} parent=11 // pred_check_branch
          %131 = sbr.rel (%p129) target = $region20
        $region19: #{tpu_custom_call.1} parent=11 // pred_region
          %s133 = ssub.s32 6272, 6272
          %134 = vsyncadd [#allocation7], %s133
          %s135 = sshll.u32 [#allocation6], 4
          %s136 = int_to_ptr.vmem [resolvable:$true] %s135
          %141 = dma.hbm_to_vmem [thread:$0]  %s2, 6272, %s136, [#allocation7], 128, 128, 8
        $region20: #{tpu_custom_call.1} parent=11 // pred_fallthru
          _
      $region12: #{tpu_custom_call.1} parent=5 // pred_fallthru
        _
      %p142 = scmp.lt.s32.totalorder %s17, 2
      // Predicated region
      $region21: #{tpu_custom_call.1} parent=5 // pred_check
        %p143 = pneg %p142
      $region22: #{tpu_custom_call.1} parent=5 // pred_check_branch
        %145 = sbr.rel (%p143) target = $region24
      $region23: #{tpu_custom_call.1} parent=5 // pred_region
        // Predicated region
        $region25: #{tpu_custom_call.1} parent=23 // pred_check
          %p146 = pneg %p58
        $region26: #{tpu_custom_call.1} parent=23 // pred_check_branch
          %148 = sbr.rel (%p146) target = $region28
        $region27: #{tpu_custom_call.1} parent=23 // pred_region
          %s149 = sand.u32 %s48, 1
          %s150 = scalar_lea.sflag [#allocation4], %s149
          %s151 = sand.u32 %s48, 1
          %s152 = smul.addr %s151, 8
          %s153 = scalar_lea.vmem [#allocation3], %s152
          %s155 = ssub.s32 128, 128
          %156 = vsyncadd %s150, %s155
          %s157 = smul.addr %s17, 128
          %s158 = scalar_lea.hbm %s1, %s157
          %s160 = sshll.u32 %s153, 4
          %s161 = int_to_ptr.vmem [resolvable:$true] %s160
          %163 = dma.hbm_to_vmem [thread:$0]  %s158, 128, %s161, %s150
        $region28: #{tpu_custom_call.1} parent=23 // pred_fallthru
          _
      $region24: #{tpu_custom_call.1} parent=5 // pred_fallthru
        _
      %p164 = scmp.le.s32.totalorder 1, %s17
      %p165 = scmp.lt.s32.totalorder %s17, 3
      %p166 = pnand %p164, %p165
      %p167 = pneg %p166
      // Predicated region
      $region29: #{tpu_custom_call.1} parent=5 // pred_check
        _
      $region30: #{tpu_custom_call.1} parent=5 // pred_check_branch
        %169 = sbr.rel (%p166) target = $region32
      $region31: #{tpu_custom_call.1} parent=5 // pred_region
        %s170 = ssub.s32 %s17, 1
        %s171 = sand.u32 %s51, 1
        %s172 = scalar_lea.sflag [#allocation4], %s171
        %s173 = sand.u32 %s51, 1
        %s174 = smul.addr %s173, 8
        %s175 = scalar_lea.vmem [#allocation3], %s174
        // Predicated region
        $region33: #{tpu_custom_call.1} parent=31 // pred_check
          %p176 = pneg %p64
        $region34: #{tpu_custom_call.1} parent=31 // pred_check_branch
          %178 = sbr.rel (%p176) target = $region36
        $region35: #{tpu_custom_call.1} parent=31 // pred_region
          %179 = dma.done %s172, 128
        $region36: #{tpu_custom_call.1} parent=31 // pred_fallthru
          _
        // Predicated region
        $region37: #{tpu_custom_call.1} parent=31 // pred_check
          %p180 = pneg %p85
        $region38: #{tpu_custom_call.1} parent=31 // pred_check_branch
          %182 = sbr.rel (%p180) target = $region40
        $region39: #{tpu_custom_call.1} parent=31 // pred_region
          %183 = dma.done [#allocation7], 6272
        $region40: #{tpu_custom_call.1} parent=31 // pred_fallthru
          _
        %p184 = pneg %p38
        %p185 = pneg %p35
        %s186 = sand.u32 %s51, 1
        %s187 = scalar_lea.sflag [#allocation4], %s186
        %s188 = sand.u32 %s51, 1
        %s189 = smul.addr %s188, 8
        %s190 = scalar_lea.vmem [#allocation3], %s189
        %p191 = pneg %p64
        %p192 = pneg %p61
        %p193 = pneg %p85
        %p194 = pneg %p82
        %p195 = pneg %p111
        %p196 = pneg %p108
        %s197 = sand.u32 %s98, 1
        %s198 = scalar_lea.sflag [#allocation5], %s197
        %s199 = sand.u32 %s98, 1
        %s200 = smul.addr %s199, 8
        %s201 = scalar_lea.vmem [#allocation8], %s200
        %v202 = vld [vmem:[%s175] sm:$0xff]
        %v203 = vld [vmem:[#allocation6] sm:$0xff]
        %v204 = vld [vmem:[#allocation6 + $0x8] sm:$0xff]
        %v205 = vld [vmem:[#allocation6 + $0x10] sm:$0xff]
        %v206 = vld [vmem:[#allocation6 + $0x18] sm:$0xff]
        %v207 = vld [vmem:[#allocation6 + $0x20] sm:$0xff]
        %v208 = vld [vmem:[#allocation6 + $0x28] sm:$0xff]
        %v209 = vld [vmem:[#allocation6 + $0x30] sm:$0xff]
        %v210 = vld [vmem:[#allocation6 + $0x38] sm:$0xff]
        %v211 = vld [vmem:[#allocation6 + $0x40] sm:$0xff]
        %v212 = vld [vmem:[#allocation6 + $0x48] sm:$0xff]
        %v213 = vld [vmem:[#allocation6 + $0x50] sm:$0xff]
        %v214 = vld [vmem:[#allocation6 + $0x58] sm:$0xff]
        %v215 = vld [vmem:[#allocation6 + $0x60] sm:$0xff]
        %v216 = vld [vmem:[#allocation6 + $0x68] sm:$0xff]
        %v217 = vld [vmem:[#allocation6 + $0x70] sm:$0xff]
        %v218 = vld [vmem:[#allocation6 + $0x78] sm:$0xff]
        %v219 = vld [vmem:[#allocation6 + $0x80] sm:$0xff]
        %v220 = vld [vmem:[#allocation6 + $0x88] sm:$0xff]
        %v221 = vld [vmem:[#allocation6 + $0x90] sm:$0xff]
        %v222 = vld [vmem:[#allocation6 + $0x98] sm:$0xff]
        %v223 = vld [vmem:[#allocation6 + $0xa0] sm:$0xff]
        %v224 = vld [vmem:[#allocation6 + $0xa8] sm:$0xff]
        %v225 = vld [vmem:[#allocation6 + $0xb0] sm:$0xff]
        %v226 = vld [vmem:[#allocation6 + $0xb8] sm:$0xff]
        %v227 = vld [vmem:[#allocation6 + $0xc0] sm:$0xff]
        %v228 = vld [vmem:[#allocation6 + $0xc8] sm:$0xff]
        %v229 = vld [vmem:[#allocation6 + $0xd0] sm:$0xff]
        %v230 = vld [vmem:[#allocation6 + $0xd8] sm:$0xff]
        %v231 = vld [vmem:[#allocation6 + $0xe0] sm:$0xff]
        %v232 = vld [vmem:[#allocation6 + $0xe8] sm:$0xff]
        %v233 = vld [vmem:[#allocation6 + $0xf0] sm:$0xff]
        %v234 = vld [vmem:[#allocation6 + $0xf8] sm:$0xff]
        %v235 = vld [vmem:[#allocation6 + $0x100] sm:$0xff]
        %v236 = vld [vmem:[#allocation6 + $0x108] sm:$0xff]
        %v237 = vld [vmem:[#allocation6 + $0x110] sm:$0xff]
        %v238 = vld [vmem:[#allocation6 + $0x118] sm:$0xff]
        %v239 = vld [vmem:[#allocation6 + $0x120] sm:$0xff]
        %v240 = vld [vmem:[#allocation6 + $0x128] sm:$0xff]
        %v241 = vld [vmem:[#allocation6 + $0x130] sm:$0xff]
        %v242 = vld [vmem:[#allocation6 + $0x138] sm:$0xff]
        %v243 = vld [vmem:[#allocation6 + $0x140] sm:$0xff]
        %v244 = vld [vmem:[#allocation6 + $0x148] sm:$0xff]
        %v245 = vld [vmem:[#allocation6 + $0x150] sm:$0xff]
        %v246 = vld [vmem:[#allocation6 + $0x158] sm:$0xff]
        %v247 = vld [vmem:[#allocation6 + $0x160] sm:$0xff]
        %v248 = vld [vmem:[#allocation6 + $0x168] sm:$0xff]
        %v249 = vld [vmem:[#allocation6 + $0x170] sm:$0xff]
        %v250 = vld [vmem:[#allocation6 + $0x178] sm:$0xff]
        %v251 = vld [vmem:[#allocation6 + $0x180] sm:$0xff]
        %v252 = vlaneseq
        %v253 = vshrl.u32 %v252, 7
        %v254 = vsub.s32 0, %v253
        %v255 = vrot.slane %v251, %v254
        %256 = vmatprep.subr.mxu0 0.0
        %257 = vmatpush1.msra.mxu0 %v218
        %258 = vmatprep.subr.mxu0 0.0
        %259 = vmatpush1.msra.mxu0 %v217
        %260 = vmatprep.subr.mxu0 0.0
        %261 = vmatpush1.msra.mxu0 %v216
        %262 = vmatprep.subr.mxu0 0.0
        %263 = vmatpush1.msra.mxu0 %v215
        %264 = vmatprep.subr.mxu0 0.0
        %265 = vmatpush1.msra.mxu0 %v214
        %266 = vmatprep.subr.mxu0 0.0
        %267 = vmatpush1.msra.mxu0 %v213
        %268 = vmatprep.subr.mxu0 0.0
        %269 = vmatpush1.msra.mxu0 %v212
        %270 = vmatprep.subr.mxu0 0.0
        %271 = vmatpush1.msra.mxu0 %v211
        %272 = vmatprep.subr.mxu0 0.0
        %273 = vmatpush1.msra.mxu0 %v210
        %274 = vmatprep.subr.mxu0 0.0
        %275 = vmatpush1.msra.mxu0 %v209
        %276 = vmatprep.subr.mxu0 0.0
        %277 = vmatpush1.msra.mxu0 %v208
        %278 = vmatprep.subr.mxu0 0.0
        %279 = vmatpush1.msra.mxu0 %v207
        %280 = vmatprep.subr.mxu0 0.0
        %281 = vmatpush1.msra.mxu0 %v206
        %282 = vmatprep.subr.mxu0 0.0
        %283 = vmatpush1.msra.mxu0 %v205
        %284 = vmatprep.subr.mxu0 0.0
        %285 = vmatpush1.msra.mxu0 %v204
        %286 = vmatprep.subr.mxu0 0.0
        %287 = vmatpush1.msra.mxu0 %v203
        %288 = vmatprep.subr.mxu0 0.0
        %289 = vmatpush2.msra.mxu0 0.0
        %290 = vmatprep.subr.mxu0 0.0
        %291 = vmatpush2.msra.mxu0 0.0
        %292 = vmatprep.subr.mxu0 0.0
        %293 = vmatpush2.msra.mxu0 0.0
        %294 = vmatprep.subr.mxu0 0.0
        %295 = vmatpush2.msra.mxu0 0.0
        %296 = vmatprep.subr.mxu0 0.0
        %297 = vmatpush2.msra.mxu0 0.0
        %298 = vmatprep.subr.mxu0 0.0
        %299 = vmatpush2.msra.mxu0 0.0
        %300 = vmatprep.subr.mxu0 0.0
        %301 = vmatpush2.msra.mxu0 0.0
        %302 = vmatprep.subr.mxu0 0.0
        %303 = vmatpush2.msra.mxu0 0.0
        %304 = vmatprep.subr.mxu0 0.0
        %305 = vmatpush2.msra.mxu0 0.0
        %306 = vmatprep.subr.mxu0 0.0
        %307 = vmatpush2.msra.mxu0 0.0
        %308 = vmatprep.subr.mxu0 0.0
        %309 = vmatpush2.msra.mxu0 0.0
        %310 = vmatprep.subr.mxu0 0.0
        %311 = vmatpush2.msra.mxu0 0.0
        %312 = vmatprep.subr.mxu0 0.0
        %313 = vmatpush2.msra.mxu0 0.0
        %314 = vmatprep.subr.mxu0 0.0
        %315 = vmatpush2.msra.mxu0 0.0
        %316 = vmatprep.subr.mxu0 0.0
        %317 = vmatpush2.msra.mxu0 0.0
        %318 = vmatprep.subr.mxu0 0.0
        %319 = vmatpush2.msra.mxu0 0.0
        %320 = vmatprep.mubr.f32.mxu0 0.0
        %321 = vmatmul.mubr.f32.gmra.mxu0 %v202
        %v322 = vpop.f32.mrf.mxu0
        %v323 = vadd.f32 %v255, %v322
        %v324 = vpop.f32.mrf.mxu0
        %325 = vdwg.mxu0
        %v326 = vmax.f32 %v323, 0.0
        %v327 = vlaneseq
        %v328 = vshrl.u32 %v327, 7
        %v329 = vsub.s32 1, %v328
        %v330 = vrot.slane %v251, %v329
        %331 = vmatprep.subr.mxu0 0.0
        %332 = vmatpush1.msra.mxu0 %v234
        %333 = vmatprep.subr.mxu0 0.0
        %334 = vmatpush1.msra.mxu0 %v233
        %335 = vmatprep.subr.mxu0 0.0
        %336 = vmatpush1.msra.mxu0 %v232
        %337 = vmatprep.subr.mxu0 0.0
        %338 = vmatpush1.msra.mxu0 %v231
        %339 = vmatprep.subr.mxu0 0.0
        %340 = vmatpush1.msra.mxu0 %v230
        %341 = vmatprep.subr.mxu0 0.0
        %342 = vmatpush1.msra.mxu0 %v229
        %343 = vmatprep.subr.mxu0 0.0
        %344 = vmatpush1.msra.mxu0 %v228
        %345 = vmatprep.subr.mxu0 0.0
        %346 = vmatpush1.msra.mxu0 %v227
        %347 = vmatprep.subr.mxu0 0.0
        %348 = vmatpush1.msra.mxu0 %v226
        %349 = vmatprep.subr.mxu0 0.0
        %350 = vmatpush1.msra.mxu0 %v225
        %351 = vmatprep.subr.mxu0 0.0
        %352 = vmatpush1.msra.mxu0 %v224
        %353 = vmatprep.subr.mxu0 0.0
        %354 = vmatpush1.msra.mxu0 %v223
        %355 = vmatprep.subr.mxu0 0.0
        %356 = vmatpush1.msra.mxu0 %v222
        %357 = vmatprep.subr.mxu0 0.0
        %358 = vmatpush1.msra.mxu0 %v221
        %359 = vmatprep.subr.mxu0 0.0
        %360 = vmatpush1.msra.mxu0 %v220
        %361 = vmatprep.subr.mxu0 0.0
        %362 = vmatpush1.msra.mxu0 %v219
        %363 = vmatprep.subr.mxu0 0.0
        %364 = vmatpush2.msra.mxu0 0.0
        %365 = vmatprep.subr.mxu0 0.0
        %366 = vmatpush2.msra.mxu0 0.0
        %367 = vmatprep.subr.mxu0 0.0
        %368 = vmatpush2.msra.mxu0 0.0
        %369 = vmatprep.subr.mxu0 0.0
        %370 = vmatpush2.msra.mxu0 0.0
        %371 = vmatprep.subr.mxu0 0.0
        %372 = vmatpush2.msra.mxu0 0.0
        %373 = vmatprep.subr.mxu0 0.0
        %374 = vmatpush2.msra.mxu0 0.0
        %375 = vmatprep.subr.mxu0 0.0
        %376 = vmatpush2.msra.mxu0 0.0
        %377 = vmatprep.subr.mxu0 0.0
        %378 = vmatpush2.msra.mxu0 0.0
        %379 = vmatprep.subr.mxu0 0.0
        %380 = vmatpush2.msra.mxu0 0.0
        %381 = vmatprep.subr.mxu0 0.0
        %382 = vmatpush2.msra.mxu0 0.0
        %383 = vmatprep.subr.mxu0 0.0
        %384 = vmatpush2.msra.mxu0 0.0
        %385 = vmatprep.subr.mxu0 0.0
        %386 = vmatpush2.msra.mxu0 0.0
        %387 = vmatprep.subr.mxu0 0.0
        %388 = vmatpush2.msra.mxu0 0.0
        %389 = vmatprep.subr.mxu0 0.0
        %390 = vmatpush2.msra.mxu0 0.0
        %391 = vmatprep.subr.mxu0 0.0
        %392 = vmatpush2.msra.mxu0 0.0
        %393 = vmatprep.subr.mxu0 0.0
        %394 = vmatpush2.msra.mxu0 0.0
        %395 = vmatprep.mubr.f32.mxu0 0.0
        %396 = vmatmul.mubr.f32.gmra.mxu0 %v326
        %v397 = vpop.f32.mrf.mxu0
        %v398 = vadd.f32 %v330, %v397
        %v399 = vpop.f32.mrf.mxu0
        %400 = vdwg.mxu0
        %v401 = vlaneseq
        %v402 = vand.u32 %v401, 127
        %vm403 = vcmp.lt.s32.totalorder %v402, 16
        %v404 = vsel %vm403, %v398, -1e+30
        %405 = vmax.xlane.f32.xlu0 %v404
        %v406 = vpop.xlane.xlu0 %405
        %v407 = vsub.f32 %v404, %v406
        %v408 = vmul.f32 %v407, 1.442695
        %v409 = vpow.pop %v408
        %410 = vadd.xlane.f32.xlu0 %v409
        %v411 = vpop.xlane.xlu0 %410
        %v412 = vrcp.pop %v411
        %v413 = vmul.f32 %v409, %v412
        %v414 = vlaneseq
        %v415 = vshrl.u32 %v414, 7
        %v416 = vsub.s32 2, %v415
        %v417 = vrot.slane %v251, %v416
        %v418 = vsub.f32 %v413, %v417
        %v419 = vadd.f32 %v418, 1e-06
        %v420 = vsel %vm403, %v419, 0.0
        %v421 = vmul.f32 %v420, %v420
        %422 = vadd.xlane.f32.xlu0 %v421
        %v423 = vpop.xlane.xlu0 %422
        %v424 = vrsqrt.pop %v423
        %v425 = vmul.f32 %v423, %v424
        %vm426 = vcmp.eq.f32.partialorder %v423, inf
        %v427 = vsel %vm426, %v423, %v425
        %vm428 = vcmp.eq.f32.partialorder %v423, 0.0
        %v429 = vand.u32 %v423, 2147483648
        %v430 = vsel %vm428, %v429, %v427
        %s431 = sld [smem:[#allocation2]]
        %v432 = vstv %s431
        %vm433 = vcmp.lt.f32.partialorder %v430, %v432
        %v434 = vxor.u32 %v398, 2147483648
        %v435 = vmul.f32 %v434, 1.442695
        %v436 = vpow.pop %v435
        %v437 = vadd.f32 %v436, 1.0
        %v438 = vrcp.pop %v437
        %v439 = vmul.f32 1.0, %v438
        %v440 = vmul.f32 %v202, %v439
        %v441 = vsel %vm433, 1, 0
        %vm442 = vcmp.eq.s32.totalorder %v441, 1
        %v443 = vsel %vm442, %v202, %v440
        %v444 = vlaneseq
        %v445 = vshrl.u32 %v444, 7
        %v446 = vsub.s32 3, %v445
        %v447 = vrot.slane %v251, %v446
        %448 = vmatprep.subr.mxu0 0.0
        %449 = vmatpush1.msra.mxu0 %v250
        %450 = vmatprep.subr.mxu0 0.0
        %451 = vmatpush1.msra.mxu0 %v249
        %452 = vmatprep.subr.mxu0 0.0
        %453 = vmatpush1.msra.mxu0 %v248
        %454 = vmatprep.subr.mxu0 0.0
        %455 = vmatpush1.msra.mxu0 %v247
        %456 = vmatprep.subr.mxu0 0.0
        %457 = vmatpush1.msra.mxu0 %v246
        %458 = vmatprep.subr.mxu0 0.0
        %459 = vmatpush1.msra.mxu0 %v245
        %460 = vmatprep.subr.mxu0 0.0
        %461 = vmatpush1.msra.mxu0 %v244
        %462 = vmatprep.subr.mxu0 0.0
        %463 = vmatpush1.msra.mxu0 %v243
        %464 = vmatprep.subr.mxu0 0.0
        %465 = vmatpush1.msra.mxu0 %v242
        %466 = vmatprep.subr.mxu0 0.0
        %467 = vmatpush1.msra.mxu0 %v241
        %468 = vmatprep.subr.mxu0 0.0
        %469 = vmatpush1.msra.mxu0 %v240
        %470 = vmatprep.subr.mxu0 0.0
        %471 = vmatpush1.msra.mxu0 %v239
        %472 = vmatprep.subr.mxu0 0.0
        %473 = vmatpush1.msra.mxu0 %v238
        %474 = vmatprep.subr.mxu0 0.0
        %475 = vmatpush1.msra.mxu0 %v237
        %476 = vmatprep.subr.mxu0 0.0
        %477 = vmatpush1.msra.mxu0 %v236
        %478 = vmatprep.subr.mxu0 0.0
        %479 = vmatpush1.msra.mxu0 %v235
        %480 = vmatprep.subr.mxu0 0.0
        %481 = vmatpush2.msra.mxu0 0.0
        %482 = vmatprep.subr.mxu0 0.0
        %483 = vmatpush2.msra.mxu0 0.0
        %484 = vmatprep.subr.mxu0 0.0
        %485 = vmatpush2.msra.mxu0 0.0
        %486 = vmatprep.subr.mxu0 0.0
        %487 = vmatpush2.msra.mxu0 0.0
        %488 = vmatprep.subr.mxu0 0.0
        %489 = vmatpush2.msra.mxu0 0.0
        %490 = vmatprep.subr.mxu0 0.0
        %491 = vmatpush2.msra.mxu0 0.0
        %492 = vmatprep.subr.mxu0 0.0
        %493 = vmatpush2.msra.mxu0 0.0
        %494 = vmatprep.subr.mxu0 0.0
        %495 = vmatpush2.msra.mxu0 0.0
        %496 = vmatprep.subr.mxu0 0.0
        %497 = vmatpush2.msra.mxu0 0.0
        %498 = vmatprep.subr.mxu0 0.0
        %499 = vmatpush2.msra.mxu0 0.0
        %500 = vmatprep.subr.mxu0 0.0
        %501 = vmatpush2.msra.mxu0 0.0
        %502 = vmatprep.subr.mxu0 0.0
        %503 = vmatpush2.msra.mxu0 0.0
        %504 = vmatprep.subr.mxu0 0.0
        %505 = vmatpush2.msra.mxu0 0.0
        %506 = vmatprep.subr.mxu0 0.0
        %507 = vmatpush2.msra.mxu0 0.0
        %508 = vmatprep.subr.mxu0 0.0
        %509 = vmatpush2.msra.mxu0 0.0
        %510 = vmatprep.subr.mxu0 0.0
        %511 = vmatpush2.msra.mxu0 0.0
        %512 = vmatprep.mubr.f32.mxu0 0.0
        %513 = vmatmul.mubr.f32.gmra.mxu0 %v398
        %v514 = vpop.f32.mrf.mxu0
        %v515 = vadd.f32 %v447, %v514
        %v516 = vpop.f32.mrf.mxu0
        %517 = vdwg.mxu0
        %v518 = vcvt.s32.f32 %v441
        %v519 = vsel %vm403, %v443, 0.0
        %v520 = vadd.f32 %v519, %v515
        %vm521 = vcmp.eq.s32.totalorder %v402, 32
        %v522 = vsel %vm521, %v518, 0.0
        %v523 = vadd.f32 %v520, %v522
        %524 = vst [vmem:[%s201] sm:$0xff] %v523
        %s525 = sand.u32 %s98, 1
        %s526 = scalar_lea.sflag [#allocation5], %s525
        %s527 = sand.u32 %s98, 1
        %s528 = smul.addr %s527, 8
        %s529 = scalar_lea.vmem [#allocation8], %s528
        // Predicated region
        $region41: #{tpu_custom_call.1} parent=31 // pred_check
          %p530 = pneg %p108
        $region42: #{tpu_custom_call.1} parent=31 // pred_check_branch
          %532 = sbr.rel (%p530) target = $region44
        $region43: #{tpu_custom_call.1} parent=31 // pred_region
          %s534 = ssub.s32 128, 128
          %535 = vsyncadd %s526, %s534
          %s536 = smul.addr %s22, 128
          %s537 = scalar_lea.hbm %s3, %s536
          %s539 = sshll.u32 %s529, 4
          %s540 = int_to_ptr.vmem [resolvable:$true] %s539
          %542 = dma.vmem_to_hbm [thread:$0]  %s540, 128, %s537, %s526
        $region44: #{tpu_custom_call.1} parent=31 // pred_fallthru
          _
      $region32: #{tpu_custom_call.1} parent=5 // pred_fallthru
        _
      %p543 = scmp.le.s32.totalorder 2, %s17
      // Predicated region
      $region45: #{tpu_custom_call.1} parent=5 // pred_check
        %p544 = pneg %p543
      $region46: #{tpu_custom_call.1} parent=5 // pred_check_branch
        %546 = sbr.rel (%p544) target = $region48
      $region47: #{tpu_custom_call.1} parent=5 // pred_region
        %s547 = ssub.s32 %s17, 2
        // Predicated region
        $region49: #{tpu_custom_call.1} parent=47 // pred_check
          %p548 = pneg %p114
        $region50: #{tpu_custom_call.1} parent=47 // pred_check_branch
          %550 = sbr.rel (%p548) target = $region52
        $region51: #{tpu_custom_call.1} parent=47 // pred_region
          %s551 = sand.u32 %s99, 1
          %s552 = scalar_lea.sflag [#allocation5], %s551
          %s553 = sand.u32 %s99, 1
          %s554 = smul.addr %s553, 8
          %s555 = scalar_lea.vmem [#allocation8], %s554
          %556 = dma.done %s552, 128
        $region52: #{tpu_custom_call.1} parent=47 // pred_fallthru
          _
      $region48: #{tpu_custom_call.1} parent=5 // pred_fallthru
        _
    $region6: #{tpu_custom_call.1} parent=1 // loop_footer
      %s21 = sadd.s32 1, %s17
    $region7: #{tpu_custom_call.1} parent=1 // loop_footer_branch
      %16 = sbr.rel target = $region3
    $region8: #{tpu_custom_call.1} parent=1 // loop_exit
      _
    %557 = vsyncpa [#allocation4], 1
    %s558 = scalar_lea.sflag [#allocation4], 1
    %559 = vsyncpa %s558, 1
    %560 = vsyncpa [#allocation7], 1
    %561 = vsyncpa [#allocation5], 1
    %s562 = scalar_lea.sflag [#allocation5], 1
    %563 = vsyncpa %s562, 1

</llo_original>
